<compile_context>
chip_gen: v7x
topology: tpu7x:2x2x1
jax: 0.10.0
libtpu: 0.0.40
codegen_flags: <defaults>
</compile_context>

<pallas_src>
import math
import functools
import operator

import jax
import jax.numpy as jnp
from jax import lax
from jax.experimental import pallas as pl
from jax.experimental.pallas import tpu as pltpu


def _round_up(x, m):
    return ((x + m - 1) // m) * m


def _geglu_kernel(x_ref, w_ref, b_ref, o_ref):
    # x_ref : (tm, dim_in)        row tile of the input (native dtype -> MXU)
    # w_ref : (2, tn, dim_in)     [value; gate] weight tile, PyTorch (out,in) layout
    # b_ref : (2, tn)             [value; gate] bias tile
    # o_ref : (tm, tn)
    x = x_ref[...]
    # Contract x[-1] with w[-1] (i.e. x @ w.T) -- MXU with f32 accumulation.
    dn = (((1,), (1,)), ((), ()))
    h = lax.dot_general(x, w_ref[0], dn, preferred_element_type=jnp.float32)
    g = lax.dot_general(x, w_ref[1], dn, preferred_element_type=jnp.float32)

    # Epilogue in f32: bias add + exact (erf) GELU + gate multiply.
    h = h + b_ref[0:1, :].astype(jnp.float32)
    g = g + b_ref[1:2, :].astype(jnp.float32)
    gelu_g = 0.5 * g * (1.0 + lax.erf(g * (1.0 / math.sqrt(2.0))))

    o_ref[...] = (h * gelu_g).astype(o_ref.dtype)


def _tile_bytes(tm, tn, dim_in, x_dtype, w_dtype):
    """Per-step VMEM footprint of one set of tiles (single-buffered)."""
    x_it = jnp.dtype(x_dtype).itemsize
    w_it = jnp.dtype(w_dtype).itemsize
    return (tm * dim_in * x_it            # x tile
            + 2 * tn * dim_in * w_it      # fused [value; gate] weight tile
            + 2 * tn * w_it               # bias tile
            + tm * tn * x_it)             # output tile


def geglu(x, weight, bias, *, tm=256, tn=None):
    """GEGLU forward.

    x      : (..., dim_in)          token activations (e.g. (batch, seq, dim_in))
    weight : (2*dim_out, dim_in)    PyTorch nn.Linear layout (value half first)
    bias   : (2*dim_out,)
    returns: (..., dim_out)
    """
    *lead, dim_in = x.shape
    two_dim_out, w_dim_in = weight.shape
    assert w_dim_in == dim_in
    assert two_dim_out % 2 == 0
    dim_out = two_dim_out // 2
    assert bias.shape == (two_dim_out,)

    M = functools.reduce(operator.mul, lead, 1)
    x2d = x.reshape(M, dim_in)

    # --- row tile: multiple of 8, independent of M; pad rows if needed. -----
    tm = min(tm, _round_up(M, 8))
    m_pad = _round_up(M, tm)
    if m_pad != M:
        x2d = jnp.pad(x2d, ((0, m_pad - M), (0, 0)))

    # --- N tile: lane-dense multiple of 128 when possible, sized so the ----
    # --- double-buffered tile footprint stays within a comfortable budget. --
    vmem_budget = 40 << 20  # leave headroom below the 64 MiB physical floor (v7x)
    if tn is None:
        candidates = [c for c in (512, 256, 128) if dim_out % c == 0]
        if not candidates:
            candidates = [dim_out]
        tn = candidates[0]
        for cand in candidates:
            tn = cand
            if 2 * _tile_bytes(tm, cand, dim_in, x.dtype, weight.dtype) <= vmem_budget:
                break
    assert dim_out % tn == 0

    num_m = m_pad // tm
    num_n = dim_out // tn

    # Free (contiguous) reshapes into the [value; gate] stacked layout.
    w3 = weight.reshape(2, dim_out, dim_in)
    b2 = bias.reshape(2, dim_out)

    # --- Grid ordering: minimize total HBM traffic. --------------------------
    # Pallas skips the DMA when a block index is unchanged between consecutive
    # grid steps, so the operand whose index map is constant along the inner
    # axis is fetched from HBM exactly once.
    traffic_n_outer = x2d.nbytes * num_n + w3.nbytes       # weight resident
    traffic_m_outer = x2d.nbytes + w3.nbytes * num_m       # x tile resident
    if traffic_n_outer <= traffic_m_outer:
        grid = (num_n, num_m)           # inner = rows; weight tile stays put
        x_map = lambda j, i: (i, 0)
        w_map = lambda j, i: (0, j, 0)
        b_map = lambda j, i: (0, j)
        o_map = lambda j, i: (i, j)
    else:
        grid = (num_m, num_n)           # inner = cols; x tile stays put
        x_map = lambda i, j: (i, 0)
        w_map = lambda i, j: (0, j, 0)
        b_map = lambda i, j: (0, j)
        o_map = lambda i, j: (i, j)

    # --- VMEM limit: double-buffered tiles + f32 intermediates + headroom. ---
    tile_bytes = _tile_bytes(tm, tn, dim_in, x.dtype, weight.dtype)
    vmem_limit = int(min(max(4 * tile_bytes + 4 * tm * tn * 4, 32 << 20),
                         64 << 20))

    cost = pl.CostEstimate(
        flops=2 * M * dim_in * 2 * dim_out,
        transcendentals=M * dim_out,
        bytes_accessed=int(x2d.nbytes + w3.nbytes + b2.nbytes
                           + M * dim_out * jnp.dtype(x.dtype).itemsize),
    )

    out2d = pl.pallas_call(
        _geglu_kernel,
        out_shape=jax.ShapeDtypeStruct((m_pad, dim_out), x.dtype),
        grid_spec=pltpu.PrefetchScalarGridSpec(
            num_scalar_prefetch=0,
            grid=grid,
            in_specs=[
                pl.BlockSpec((tm, dim_in), x_map),
                pl.BlockSpec((2, tn, dim_in), w_map),
                pl.BlockSpec((2, tn), b_map),
            ],
            out_specs=pl.BlockSpec((tm, tn), o_map),
        ),
        compiler_params=pltpu.CompilerParams(
            dimension_semantics=("parallel", "parallel"),
            vmem_limit_bytes=vmem_limit),
        cost_estimate=cost,
    )(x2d, w3, b2)

    if m_pad != M:
        out2d = out2d[:M]
    return out2d.reshape(*lead, dim_out)


def _init_linear_params(key, dim_in, dim_out2):
    """Deterministic nn.Linear-style init: U(-1/sqrt(fan_in), 1/sqrt(fan_in))."""
    kw, kb = jax.random.split(key)
    bound = 1.0 / math.sqrt(dim_in)
    weight = jax.random.uniform(kw, (dim_out2, dim_in), jnp.float32,
                                minval=-bound, maxval=bound)
    bias = jax.random.uniform(kb, (dim_out2,), jnp.float32,
                              minval=-bound, maxval=bound)
    return weight, bias


if __name__ == "__main__":
    key = jax.random.PRNGKey(0)
    kx, kp = jax.random.split(key)

    batch, seq, dim_in, dim_out = 2, 8, 32, 32

    x = jax.random.normal(kx, (batch, seq, dim_in), jnp.float32)
    weight, bias = _init_linear_params(kp, dim_in, dim_out * 2)

    out = geglu(x, weight, bias)
    out = jax.block_until_ready(out)

    # Reference check in plain JAX (exact-gelu GEGLU).
    proj = x @ weight.T + bias
    h_ref, g_ref = proj[..., :dim_out], proj[..., dim_out:]
    ref = h_ref * jax.nn.gelu(g_ref, approximate=False)

    assert out.shape == (batch, seq, dim_out)
    assert jnp.allclose(out, ref, atol=1e-5, rtol=1e-5)

    print("KERNEL_OK")
</pallas_src>

<mosaic_0001>
module attributes {stable_mosaic.version = 11 : i64} {
  func.func @_geglu_kernel(%arg0: i32, %arg1: i32, %arg2: memref<16x32xf32, #tpu.memory_space<vmem>>, %arg3: memref<2x32x32xf32, #tpu.memory_space<vmem>>, %arg4: memref<2x32xf32, #tpu.memory_space<vmem>>, %arg5: memref<16x32xf32, #tpu.memory_space<vmem>>) attributes {dimension_semantics = [#tpu.dimension_semantics<parallel>, #tpu.dimension_semantics<parallel>], iteration_bounds = array<i64: 1, 1>, scalar_prefetch = 0 : i64, scratch_operands = 0 : i64, tpu.core_type = #tpu.core_type<tc>, window_params = [{transform_indices = @transform_0, window_bounds = array<i64: 16, 32>}, {transform_indices = @transform_1, window_bounds = array<i64: 2, 32, 32>}, {transform_indices = @transform_2, window_bounds = array<i64: 2, 32>}, {transform_indices = @transform_3, window_bounds = array<i64: 16, 32>}]} {
    %c0 = arith.constant 0 : index
    %c0_0 = arith.constant 0 : index
    %0 = vector.load %arg2[%c0, %c0_0] : memref<16x32xf32, #tpu.memory_space<vmem>>, vector<16x32xf32>
    %c0_1 = arith.constant 0 : index
    %c0_2 = arith.constant 0 : index
    %c0_3 = arith.constant 0 : index
    %1 = vector.load %arg3[%c0_1, %c0_2, %c0_3] : memref<2x32x32xf32, #tpu.memory_space<vmem>>, vector<1x32x32xf32>
    %2 = vector.shape_cast %1 : vector<1x32x32xf32> to vector<32x32xf32>
    %cst = arith.constant dense<0.000000e+00> : vector<16x32xf32>
    %3 = tpu.matmul %0, %2, %cst {dimension_numbers = #tpu.dot_dimension_numbers<[1], [1], [0], [0], [0, 0, 1, 0], [], []>} : vector<16x32xf32>, vector<32x32xf32>, vector<16x32xf32> -> vector<16x32xf32>
    %c1 = arith.constant 1 : index
    %c0_4 = arith.constant 0 : index
    %c0_5 = arith.constant 0 : index
    %4 = vector.load %arg3[%c1, %c0_4, %c0_5] : memref<2x32x32xf32, #tpu.memory_space<vmem>>, vector<1x32x32xf32>
    %5 = vector.shape_cast %4 : vector<1x32x32xf32> to vector<32x32xf32>
    %cst_6 = arith.constant dense<0.000000e+00> : vector<16x32xf32>
    %6 = tpu.matmul %0, %5, %cst_6 {dimension_numbers = #tpu.dot_dimension_numbers<[1], [1], [0], [0], [0, 0, 1, 0], [], []>} : vector<16x32xf32>, vector<32x32xf32>, vector<16x32xf32> -> vector<16x32xf32>
    %c0_7 = arith.constant 0 : index
    %c0_8 = arith.constant 0 : index
    %7 = vector.load %arg4[%c0_7, %c0_8] : memref<2x32xf32, #tpu.memory_space<vmem>>, vector<1x32xf32>
    %8 = vector.broadcast %7 : vector<1x32xf32> to vector<16x32xf32>
    %9 = arith.addf %3, %8 : vector<16x32xf32>
    %c1_9 = arith.constant 1 : index
    %c0_10 = arith.constant 0 : index
    %10 = vector.load %arg4[%c1_9, %c0_10] : memref<2x32xf32, #tpu.memory_space<vmem>>, vector<1x32xf32>
    %11 = vector.broadcast %10 : vector<1x32xf32> to vector<16x32xf32>
    %12 = arith.addf %6, %11 : vector<16x32xf32>
    %cst_11 = arith.constant 5.000000e-01 : f32
    %13 = vector.broadcast %cst_11 : f32 to vector<16x32xf32>
    %14 = arith.mulf %13, %12 : vector<16x32xf32>
    %cst_12 = arith.constant 0.707106769 : f32
    %15 = vector.broadcast %cst_12 : f32 to vector<16x32xf32>
    %16 = arith.mulf %12, %15 : vector<16x32xf32>
    %17 = math.erf %16 : vector<16x32xf32>
    %cst_13 = arith.constant 1.000000e+00 : f32
    %18 = vector.broadcast %cst_13 : f32 to vector<16x32xf32>
    %19 = arith.addf %18, %17 : vector<16x32xf32>
    %20 = arith.mulf %14, %19 : vector<16x32xf32>
    %21 = arith.mulf %9, %20 : vector<16x32xf32>
    %c0_14 = arith.constant 0 : index
    %c0_15 = arith.constant 0 : index
    %22 = vector.load %arg5[%c0_14, %c0_15] : memref<16x32xf32, #tpu.memory_space<vmem>>, vector<16x32xf32>
    tpu.vector_store %arg5[%c0_14, %c0_15], %21 {strides = array<i32>} : memref<16x32xf32, #tpu.memory_space<vmem>>, vector<16x32xf32>,
    return
  }
  func.func @transform_0(%arg0: i32, %arg1: i32) -> (i32, i32) {
    %c0_i32 = arith.constant 0 : i32
    %c0_i32_0 = arith.constant 0 : i32
    return %arg1, %c0_i32 : i32, i32
  }
  func.func @transform_1(%arg0: i32, %arg1: i32) -> (i32, i32, i32) {
    %c0_i32 = arith.constant 0 : i32
    %c0_i32_0 = arith.constant 0 : i32
    %c0_i32_1 = arith.constant 0 : i32
    return %c0_i32, %arg0, %c0_i32_0 : i32, i32, i32
  }
  func.func @transform_2(%arg0: i32, %arg1: i32) -> (i32, i32) {
    %c0_i32 = arith.constant 0 : i32
    %c0_i32_0 = arith.constant 0 : i32
    return %c0_i32, %arg0 : i32, i32
  }
  func.func @transform_3(%arg0: i32, %arg1: i32) -> (i32, i32) {
    %c0_i32 = arith.constant 0 : i32
    return %arg1, %arg0 : i32, i32
  }
}

</mosaic_0001>

<llo_original>
// kernel: tpu_custom_call.1
$region0: #{tpu_custom_call.1}
  #allocation0 [shape = 'u32[]', space=smem, size = 0x4, offset = 0x4, fixed_abs, tag = 'smem constant byte address 0x4 - core index']
  #allocation1 [shape = 'u32[144,128]{1,0:T(1,128)}', space=vmem, size = 0x12000, scoped, tag = 'internal scratch']
  %s0 = inlined_call_operand.hbm [shape: f32[16,32], index: 0, kind: input, shape index: {}]
  %s1 = inlined_call_operand.hbm [shape: f32[2,32,32], index: 1, kind: input, shape index: {}]
  %s2 = inlined_call_operand.vmem [shape: f32[2,32], index: 2, kind: input, shape index: {}]
  %s3 = inlined_call_operand.hbm [shape: f32[16,32], index: 3, kind: output, shape index: {}]
  %s4 = sld [smem:[#allocation0]]
  $region30: #{tpu_custom_call.1} parent=0
    _
  %s6 = ssub.s32 1, %s4
  %s7 = scalar_select 0, %s6, %s4
  $region1: #{tpu_custom_call.1} parent=0
    #allocation2 [shape = 'u8[8192]{0}', space=vmem, size = 0x2000, scoped, tag = 'input window, operand 0, single buffered']
    #allocation3 [shape = 's32[1]{0}', space=sflag, size = 0x4, scoped, tag = 'scoped memory for tpu_custom_call.1']
    #allocation4 [shape = 's32[1]{0}', space=sflag, size = 0x4, scoped, tag = 'scoped memory for tpu_custom_call.1']
    #allocation5 [shape = 'u8[32768]{0}', space=vmem, size = 0x8000, scoped, tag = 'input window, operand 1, single buffered']
    #allocation6 [shape = 's32[1]{0}', space=sflag, size = 0x4, scoped, tag = 'scoped memory for tpu_custom_call.1']
    #allocation7 [shape = 'u8[8192]{0}', space=vmem, size = 0x2000, scoped, tag = 'output window, operand 0, single buffered']
    %8 = vsyncpa [#allocation3], 0
    %9 = vsyncpa [#allocation6], 0
    %10 = vsyncpa [#allocation4], 0
    // Predicated region
    $region2: #{tpu_custom_call.1} parent=1 // pred_check
      _
    $region3: #{tpu_custom_call.1} parent=1 // pred_check_branch
      %12 = sbr.rel (0) target = $region5
    $region4: #{tpu_custom_call.1} parent=1 // pred_region
      %s14 = ssub.s32 256, 256
      %15 = vsyncadd [#allocation3], %s14
      %s16 = sshll.u32 [#allocation2], 4
      %s17 = int_to_ptr.vmem [resolvable:$true] %s16
      %22 = dma.hbm_to_vmem [thread:$0]  %s0, 256, %s17, [#allocation3], 128, 128, 8
    $region5: #{tpu_custom_call.1} parent=1 // pred_fallthru
      _
    // Predicated region
    $region6: #{tpu_custom_call.1} parent=1 // pred_check
      _
    $region7: #{tpu_custom_call.1} parent=1 // pred_check_branch
      %24 = sbr.rel (0) target = $region9
    $region8: #{tpu_custom_call.1} parent=1 // pred_region
      %s26 = ssub.s32 1024, 1024
      %27 = vsyncadd [#allocation6], %s26
      %s28 = sshll.u32 [#allocation5], 4
      %s29 = int_to_ptr.vmem [resolvable:$true] %s28
      %34 = dma.hbm_to_vmem [thread:$0]  %s1, 1024, %s29, [#allocation6], 128, 128, 8
    $region9: #{tpu_custom_call.1} parent=1 // pred_fallthru
      _
    // Predicated region
    $region10: #{tpu_custom_call.1} parent=1 // pred_check
      _
    $region11: #{tpu_custom_call.1} parent=1 // pred_check_branch
      %36 = sbr.rel (0) target = $region13
    $region12: #{tpu_custom_call.1} parent=1 // pred_region
      _
    $region13: #{tpu_custom_call.1} parent=1 // pred_fallthru
      _
    // Predicated region
    $region14: #{tpu_custom_call.1} parent=1 // pred_check
      _
    $region15: #{tpu_custom_call.1} parent=1 // pred_check_branch
      %38 = sbr.rel (0) target = $region17
    $region16: #{tpu_custom_call.1} parent=1 // pred_region
      %39 = dma.done [#allocation3], 256
    $region17: #{tpu_custom_call.1} parent=1 // pred_fallthru
      _
    // Predicated region
    $region18: #{tpu_custom_call.1} parent=1 // pred_check
      _
    $region19: #{tpu_custom_call.1} parent=1 // pred_check_branch
      %41 = sbr.rel (0) target = $region21
    $region20: #{tpu_custom_call.1} parent=1 // pred_region
      %42 = dma.done [#allocation6], 1024
    $region21: #{tpu_custom_call.1} parent=1 // pred_fallthru
      _
    %v43 = vld [vmem:[#allocation2] sm:$0xff]
    %v44 = vld [vmem:[#allocation2 + $0x8] sm:$0xff]
    %v45 = vld [vmem:[#allocation5] sm:$0xff]
    %v46 = vld [vmem:[#allocation5 + $0x8] sm:$0xff]
    %v47 = vld [vmem:[#allocation5 + $0x10] sm:$0xff]
    %v48 = vld [vmem:[#allocation5 + $0x18] sm:$0xff]
    %s49 = scalar_lea.vmem [#allocation5], 32
    %v50 = vld [vmem:[%s49] sm:$0xff]
    %v51 = vld [vmem:[%s49 + $0x8] sm:$0xff]
    %v52 = vld [vmem:[%s49 + $0x10] sm:$0xff]
    %v53 = vld [vmem:[%s49 + $0x18] sm:$0xff]
    %v54 = vld [vmem:[%s2] sm:$0x1]
    %v55 = vlaneseq
    %v56 = vshrl.u32 %v55, 7
    %v57 = vsub.s32 0, %v56
    %v58 = vrot.slane %v54, %v57
    %vm59 = vcmask 261120
    %v61 = vsel %vm59, %v43, 0
    %v64 = vsel %vm59, %v44, 0
    %v67 = vsel %vm59, %v45, 0
    %v70 = vsel %vm59, %v46, 0
    %v73 = vsel %vm59, %v47, 0
    %v76 = vsel %vm59, %v48, 0
    %78 = vmatprep.subr.mxu0 0.0
    %79 = vmatpush1.xpose.msra.mxu0 %v67
    %80 = vmatprep.subr.mxu0 0.0
    %81 = vmatpush1.xpose.msra.mxu0 %v70
    %82 = vmatprep.subr.mxu0 0.0
    %83 = vmatpush1.xpose.msra.mxu0 %v73
    %84 = vmatprep.subr.mxu0 0.0
    %85 = vmatpush1.xpose.msra.mxu0 %v76
    %86 = vmatprep.subr.mxu0 0.0
    %87 = vmatpush1.xpose.msra.mxu0 0.0
    %88 = vmatprep.subr.mxu0 0.0
    %89 = vmatpush1.xpose.msra.mxu0 0.0
    %90 = vmatprep.subr.mxu0 0.0
    %91 = vmatpush1.xpose.msra.mxu0 0.0
    %92 = vmatprep.subr.mxu0 0.0
    %93 = vmatpush1.xpose.msra.mxu0 0.0
    %94 = vmatprep.subr.mxu0 0.0
    %95 = vmatpush1.xpose.msra.mxu0 0.0
    %96 = vmatprep.subr.mxu0 0.0
    %97 = vmatpush1.xpose.msra.mxu0 0.0
    %98 = vmatprep.subr.mxu0 0.0
    %99 = vmatpush1.xpose.msra.mxu0 0.0
    %100 = vmatprep.subr.mxu0 0.0
    %101 = vmatpush1.xpose.msra.mxu0 0.0
    %102 = vmatprep.subr.mxu0 0.0
    %103 = vmatpush1.xpose.msra.mxu0 0.0
    %104 = vmatprep.subr.mxu0 0.0
    %105 = vmatpush1.xpose.msra.mxu0 0.0
    %106 = vmatprep.subr.mxu0 0.0
    %107 = vmatpush1.xpose.msra.mxu0 0.0
    %108 = vmatprep.subr.mxu0 0.0
    %109 = vmatpush1.xpose.msra.mxu0 0.0
    %110 = vmatprep.subr.mxu0 0.0
    %111 = vmatpush1.xpose.msra.mxu0 0.0
    %112 = vmatprep.subr.mxu0 0.0
    %113 = vmatpush1.xpose.msra.mxu0 0.0
    %114 = vmatprep.subr.mxu0 0.0
    %115 = vmatpush1.xpose.msra.mxu0 0.0
    %116 = vmatprep.subr.mxu0 0.0
    %117 = vmatpush1.xpose.msra.mxu0 0.0
    %118 = vmatprep.subr.mxu0 0.0
    %119 = vmatpush1.xpose.msra.mxu0 0.0
    %120 = vmatprep.subr.mxu0 0.0
    %121 = vmatpush1.xpose.msra.mxu0 0.0
    %122 = vmatprep.subr.mxu0 0.0
    %123 = vmatpush1.xpose.msra.mxu0 0.0
    %124 = vmatprep.subr.mxu0 0.0
    %125 = vmatpush1.xpose.msra.mxu0 0.0
    %126 = vmatprep.subr.mxu0 0.0
    %127 = vmatpush1.xpose.msra.mxu0 0.0
    %128 = vmatprep.subr.mxu0 0.0
    %129 = vmatpush1.xpose.msra.mxu0 0.0
    %130 = vmatprep.subr.mxu0 0.0
    %131 = vmatpush1.xpose.msra.mxu0 0.0
    %132 = vmatprep.subr.mxu0 0.0
    %133 = vmatpush1.xpose.msra.mxu0 0.0
    %134 = vmatprep.subr.mxu0 0.0
    %135 = vmatpush1.xpose.msra.mxu0 0.0
    %136 = vmatprep.subr.mxu0 0.0
    %137 = vmatpush1.xpose.msra.mxu0 0.0
    %138 = vmatprep.subr.mxu0 0.0
    %139 = vmatpush1.xpose.msra.mxu0 0.0
    %140 = vmatprep.subr.mxu0 0.0
    %141 = vmatpush1.xpose.msra.mxu0 0.0
    %142 = vmatprep.mubr.f32.mxu0 0.0
    %143 = vmatmul.mubr.f32.gmra.mrb[0].mxu0 %v61
    %v144 = vpop.f32.mrb[0].mxu0
    %v145 = vadd.f32 %v58, %v144
    %v146 = vpop.f32.mrb[0].mxu0
    %147 = vmatprep.mubr.f32.mxu0 0.0
    %148 = vmatmul.mubr.f32.gmra.mrb[0].mxu0 %v64
    %v149 = vpop.f32.mrb[0].mxu0
    %v150 = vadd.f32 %v58, %v149
    %v151 = vpop.f32.mrb[0].mxu0
    %152 = vdwg.mxu0
    %v153 = vld [vmem:[%s2 + $0x1] sm:$0x1]
    %v154 = vlaneseq
    %v155 = vshrl.u32 %v154, 7
    %v156 = vsub.s32 0, %v155
    %v157 = vrot.slane %v153, %v156
    %v159 = vsel %vm59, %v50, 0
    %v162 = vsel %vm59, %v51, 0
    %v165 = vsel %vm59, %v52, 0
    %v168 = vsel %vm59, %v53, 0
    %170 = vmatprep.subr.mxu0 0.0
    %171 = vmatpush1.xpose.msra.mxu0 %v159
    %172 = vmatprep.subr.mxu0 0.0
    %173 = vmatpush1.xpose.msra.mxu0 %v162
    %174 = vmatprep.subr.mxu0 0.0
    %175 = vmatpush1.xpose.msra.mxu0 %v165
    %176 = vmatprep.subr.mxu0 0.0
    %177 = vmatpush1.xpose.msra.mxu0 %v168
    %178 = vmatprep.subr.mxu0 0.0
    %179 = vmatpush1.xpose.msra.mxu0 0.0
    %180 = vmatprep.subr.mxu0 0.0
    %181 = vmatpush1.xpose.msra.mxu0 0.0
    %182 = vmatprep.subr.mxu0 0.0
    %183 = vmatpush1.xpose.msra.mxu0 0.0
    %184 = vmatprep.subr.mxu0 0.0
    %185 = vmatpush1.xpose.msra.mxu0 0.0
    %186 = vmatprep.subr.mxu0 0.0
    %187 = vmatpush1.xpose.msra.mxu0 0.0
    %188 = vmatprep.subr.mxu0 0.0
    %189 = vmatpush1.xpose.msra.mxu0 0.0
    %190 = vmatprep.subr.mxu0 0.0
    %191 = vmatpush1.xpose.msra.mxu0 0.0
    %192 = vmatprep.subr.mxu0 0.0
    %193 = vmatpush1.xpose.msra.mxu0 0.0
    %194 = vmatprep.subr.mxu0 0.0
    %195 = vmatpush1.xpose.msra.mxu0 0.0
    %196 = vmatprep.subr.mxu0 0.0
    %197 = vmatpush1.xpose.msra.mxu0 0.0
    %198 = vmatprep.subr.mxu0 0.0
    %199 = vmatpush1.xpose.msra.mxu0 0.0
    %200 = vmatprep.subr.mxu0 0.0
    %201 = vmatpush1.xpose.msra.mxu0 0.0
    %202 = vmatprep.subr.mxu0 0.0
    %203 = vmatpush1.xpose.msra.mxu0 0.0
    %204 = vmatprep.subr.mxu0 0.0
    %205 = vmatpush1.xpose.msra.mxu0 0.0
    %206 = vmatprep.subr.mxu0 0.0
    %207 = vmatpush1.xpose.msra.mxu0 0.0
    %208 = vmatprep.subr.mxu0 0.0
    %209 = vmatpush1.xpose.msra.mxu0 0.0
    %210 = vmatprep.subr.mxu0 0.0
    %211 = vmatpush1.xpose.msra.mxu0 0.0
    %212 = vmatprep.subr.mxu0 0.0
    %213 = vmatpush1.xpose.msra.mxu0 0.0
    %214 = vmatprep.subr.mxu0 0.0
    %215 = vmatpush1.xpose.msra.mxu0 0.0
    %216 = vmatprep.subr.mxu0 0.0
    %217 = vmatpush1.xpose.msra.mxu0 0.0
    %218 = vmatprep.subr.mxu0 0.0
    %219 = vmatpush1.xpose.msra.mxu0 0.0
    %220 = vmatprep.subr.mxu0 0.0
    %221 = vmatpush1.xpose.msra.mxu0 0.0
    %222 = vmatprep.subr.mxu0 0.0
    %223 = vmatpush1.xpose.msra.mxu0 0.0
    %224 = vmatprep.subr.mxu0 0.0
    %225 = vmatpush1.xpose.msra.mxu0 0.0
    %226 = vmatprep.subr.mxu0 0.0
    %227 = vmatpush1.xpose.msra.mxu0 0.0
    %228 = vmatprep.subr.mxu0 0.0
    %229 = vmatpush1.xpose.msra.mxu0 0.0
    %230 = vmatprep.subr.mxu0 0.0
    %231 = vmatpush1.xpose.msra.mxu0 0.0
    %232 = vmatprep.subr.mxu0 0.0
    %233 = vmatpush1.xpose.msra.mxu0 0.0
    %234 = vmatprep.mubr.f32.mxu0 0.0
    %235 = vmatmul.mubr.f32.gmra.mrb[0].mxu0 %v61
    %v236 = vpop.f32.mrb[0].mxu0
    %v237 = vadd.f32 %v157, %v236
    %v238 = vpop.f32.mrb[0].mxu0
    %239 = vmatprep.mubr.f32.mxu0 0.0
    %240 = vmatmul.mubr.f32.gmra.mrb[0].mxu0 %v64
    %v241 = vpop.f32.mrb[0].mxu0
    %v242 = vadd.f32 %v157, %v241
    %v243 = vpop.f32.mrb[0].mxu0
    %244 = vdwg.mxu0
    %v245 = vmul.f32 %v237, 0.5
    %v246 = vmul.f32 %v242, 0.5
    %v247 = vmul.f32 %v237, 0.70710677
    %v248 = vmul.f32 %v242, 0.70710677
    %v249 = verf.f32.pop %v247
    %v250 = verf.f32.pop %v248
    %v251 = vadd.f32 %v249, 1.0
    %v252 = vadd.f32 %v250, 1.0
    %v253 = vmul.f32 %v245, %v251
    %v254 = vmul.f32 %v246, %v252
    %v255 = vmul.f32 %v145, %v253
    %v256 = vmul.f32 %v150, %v254
    %257 = vst.msk [vmem:[#allocation7] sm:$0xff] %vm59, %v255
    %258 = vst.msk [vmem:[#allocation7 + $0x8] sm:$0xff] %vm59, %v256
    // Predicated region
    $region22: #{tpu_custom_call.1} parent=1 // pred_check
      _
    $region23: #{tpu_custom_call.1} parent=1 // pred_check_branch
      %260 = sbr.rel (0) target = $region25
    $region24: #{tpu_custom_call.1} parent=1 // pred_region
      %s262 = ssub.s32 256, 256
      %263 = vsyncadd [#allocation4], %s262
      %s264 = sshll.u32 [#allocation7], 4
      %s265 = int_to_ptr.vmem [resolvable:$true] %s264
      %270 = dma.vmem_to_hbm [thread:$0]  %s265, 256, %s3, [#allocation4], 128, 128, 8
    $region25: #{tpu_custom_call.1} parent=1 // pred_fallthru
      _
    // Predicated region
    $region26: #{tpu_custom_call.1} parent=1 // pred_check
      _
    $region27: #{tpu_custom_call.1} parent=1 // pred_check_branch
      %272 = sbr.rel (0) target = $region29
    $region28: #{tpu_custom_call.1} parent=1 // pred_region
      %273 = dma.done [#allocation4], 256
    $region29: #{tpu_custom_call.1} parent=1 // pred_fallthru
      _
    %274 = vsyncpa [#allocation3], 1
    %275 = vsyncpa [#allocation6], 1
    %276 = vsyncpa [#allocation4], 1

</llo_original>
